<compile_context>
chip_gen: v5e
topology: v5e:2x2
jax: 0.10.0
libtpu: 0.0.40
codegen_flags: <defaults>
</compile_context>

<pallas_src>
import math

import jax
import jax.numpy as jnp
from jax import lax
from jax.experimental import pallas as pl
from jax.experimental.pallas import tpu as pltpu


def _round_up(x: int, n: int) -> int:
    return ((x + n - 1) // n) * n


# ---------------------------------------------------------------------------
# Kernel 1: B = B_half @ B_half.T  and  A = W @ B @ W.T + sigma2 * I
# (small, gridless, natural shapes — Mosaic handles internal layout padding)
# ---------------------------------------------------------------------------
def _ab_kernel(sigma2_log_ref, w_ref, bhalf_ref, a_ref, b_ref):
    bhalf = bhalf_ref[...]
    # B = B_half @ B_half.T : contract last axes directly (no in-kernel .T)
    B = lax.dot_general(bhalf, bhalf, (((1,), (1,)), ((), ())),
                        preferred_element_type=jnp.float32)
    b_ref[...] = B

    W = w_ref[...]
    WB = jnp.dot(W, B, preferred_element_type=jnp.float32)
    # A = (W @ B) @ W.T : contract last axes directly
    A = lax.dot_general(WB, W, (((1,), (1,)), ((), ())),
                        preferred_element_type=jnp.float32)

    sigma2 = jnp.exp(sigma2_log_ref[0, 0])
    m = a_ref.shape[0]
    row = lax.broadcasted_iota(jnp.int32, (m, m), 0)
    col = lax.broadcasted_iota(jnp.int32, (m, m), 1)
    a_ref[...] = jnp.where(row == col, A + sigma2, A)


# ---------------------------------------------------------------------------
# Kernel 2: K[i, j] = exp(-0.5 * (i - j)^2 / lengthscale^2)
# Tiled over a 1-D grid of full-width row blocks (or 2-D if a row is too wide).
# ---------------------------------------------------------------------------
def _make_k_kernel(neg_inv_two_ls2: float, tk_i: int, tk_j: int,
                   col_tiled: bool):
    def k_kernel(k_ref):
        i0 = pl.program_id(0) * tk_i
        if col_tiled:
            off = (i0 - pl.program_id(1) * tk_j).astype(jnp.float32)
        else:
            off = i0.astype(jnp.float32)
        di = lax.broadcasted_iota(jnp.float32, (tk_i, tk_j), 0)
        dj = lax.broadcasted_iota(jnp.float32, (tk_i, tk_j), 1)
        diff = (di - dj) + off                     # (i - j), fold offsets once
        k_ref[...] = jnp.exp((diff * diff) * neg_inv_two_ls2)
    return k_kernel


def _choose_k_tiles(T: int, budget_bytes: int):
    """Pick (tk_i, tk_j, col_tiled): full-row-width tiles when they fit."""
    budget_elems = max(budget_bytes // 4, 8 * 128)
    tj_full = _round_up(T, 128)
    if 8 * tj_full <= budget_elems:
        tk_j = tj_full                     # full row width -> contiguous slab
        col_tiled = False
    else:
        tk_j = max(128, (budget_elems // 8) // 128 * 128)
        col_tiled = True
    rows = max(8, (budget_elems // tk_j) // 8 * 8)
    tk_i = min(_round_up(T, 8), rows)
    return tk_i, tk_j, col_tiled


def pdca_forward(X, W, B_half, sigma2_log, raw_lengthscale=1.0,
                 k_tile_budget_bytes=8 * 1024 * 1024):
    """Forward pass of pdca_model. Only X.shape is used (as in the reference)."""
    T, m = X.shape
    d = W.shape[1]
    assert T < 2 ** 24, "float32 timestamps are exact only for T < 2^24"

    # lengthscale = softplus(raw_lengthscale)  (gpytorch positive constraint)
    lengthscale = math.log1p(math.exp(raw_lengthscale))
    neg_inv_two_ls2 = -0.5 / (lengthscale ** 2)

    # ---------------- A and B: small gridless call, natural shapes ------------
    W_f = W.astype(jnp.float32)
    Bh_f = B_half.astype(jnp.float32)
    sigma2_log_arr = jnp.asarray(sigma2_log, jnp.float32).reshape(1, 1)

    ab_cost = pl.CostEstimate(
        flops=2 * d ** 3 + 2 * m * d ** 2 + 2 * m ** 2 * d,
        transcendentals=1,
        bytes_accessed=4 * (m * d + 2 * d * d + m * m) + 4,
    )
    # TODO(synk): if m/d grow into the thousands, tile A over (m//tm, m//tn)
    # with a WB scratch accumulator instead of this single-block call.
    A, B = pl.pallas_call(
        _ab_kernel,
        out_shape=(
            jax.ShapeDtypeStruct((m, m), jnp.float32),  # A
            jax.ShapeDtypeStruct((d, d), jnp.float32),  # B
        ),
        in_specs=[
            pl.BlockSpec(memory_space=pltpu.MemorySpace.SMEM),  # sigma2_log
            pl.BlockSpec(memory_space=pltpu.MemorySpace.VMEM),  # W
            pl.BlockSpec(memory_space=pltpu.MemorySpace.VMEM),  # B_half
        ],
        out_specs=(
            pl.BlockSpec(memory_space=pltpu.MemorySpace.VMEM),
            pl.BlockSpec(memory_space=pltpu.MemorySpace.VMEM),
        ),
        cost_estimate=ab_cost,
    )(sigma2_log_arr, W_f, Bh_f)

    # ---------------- K: exact (T, T) output, lane-dense contiguous tiles -----
    tk_i, tk_j, col_tiled = _choose_k_tiles(T, k_tile_budget_bytes)

    k_cost = pl.CostEstimate(
        flops=4 * T * T,
        transcendentals=T * T,
        bytes_accessed=4 * T * T,
    )
    if col_tiled:
        grid = (pl.cdiv(T, tk_i), pl.cdiv(T, tk_j))
        out_spec = pl.BlockSpec((tk_i, tk_j), lambda i, j: (i, j))
        dim_sem = ("parallel", "parallel")
    else:
        grid = (pl.cdiv(T, tk_i),)
        out_spec = pl.BlockSpec((tk_i, tk_j), lambda i: (i, 0))
        dim_sem = ("parallel",)

    K = pl.pallas_call(
        _make_k_kernel(neg_inv_two_ls2, tk_i, tk_j, col_tiled),
        out_shape=jax.ShapeDtypeStruct((T, T), jnp.float32),
        grid=grid,
        out_specs=out_spec,
        compiler_params=pltpu.CompilerParams(
            dimension_semantics=dim_sem,
            vmem_limit_bytes=32 * 1024 * 1024),
        cost_estimate=k_cost,
    )()

    return A, K, B


def pdca_forward_ref(X, W, B_half, sigma2_log, raw_lengthscale=1.0):
    """Pure-JAX reference for correctness checking."""
    T, m = X.shape
    lengthscale = math.log1p(math.exp(raw_lengthscale))
    t = jnp.arange(T, dtype=jnp.float32)
    diff = t[:, None] - t[None, :]
    K = jnp.exp(-0.5 * diff * diff / (lengthscale ** 2))
    B = B_half @ B_half.T
    sigma2 = jnp.exp(jnp.asarray(sigma2_log, jnp.float32))
    A = W @ B @ W.T + sigma2 * jnp.eye(m, dtype=jnp.float32)
    return A, K, B


if __name__ == "__main__":
    key = jax.random.PRNGKey(0)
    kx, kw, kx2, kx3 = jax.random.split(key, 4)

    # --- small shapes consistent with the module: X is (T, m), latent dim d ---
    T, m, d = 16, 8, 4
    X = jax.random.normal(kx, (T, m), dtype=jnp.float32)
    # Deterministic parameter init mirroring __init__:
    W = jax.random.normal(kw, (m, d), dtype=jnp.float32)   # torch.randn((m, d))
    B_half = jnp.eye(d, dtype=jnp.float32)                 # torch.eye(d)
    sigma2_log = 0.0                                        # torch.tensor(0)

    A, K, B = pdca_forward(X, W, B_half, sigma2_log)
    jax.block_until_ready((A, K, B))

    A_ref, K_ref, B_ref = pdca_forward_ref(X, W, B_half, sigma2_log)
    assert jnp.allclose(A, A_ref, atol=1e-4, rtol=1e-4)
    assert jnp.allclose(K, K_ref, atol=1e-5, rtol=1e-5)
    assert jnp.allclose(B, B_ref, atol=1e-5, rtol=1e-5)

    # --- T not a multiple of 8/128: exercises boundary-clipped output tiles ---
    T2 = 260
    X2 = jax.random.normal(kx2, (T2, m), dtype=jnp.float32)
    A2, K2, B2 = pdca_forward(X2, W, B_half, sigma2_log)
    jax.block_until_ready((A2, K2, B2))
    A2_ref, K2_ref, B2_ref = pdca_forward_ref(X2, W, B_half, sigma2_log)
    assert jnp.allclose(A2, A2_ref, atol=1e-4, rtol=1e-4)
    assert jnp.allclose(K2, K2_ref, atol=1e-5, rtol=1e-5)
    assert jnp.allclose(B2, B2_ref, atol=1e-5, rtol=1e-5)

    # --- small tile budgets to exercise (a) multi-row-block 1-D grid and ------
    # --- (b) the 2-D column-tiled fallback, both with boundary tiles ----------
    T3 = 520
    X3 = jax.random.normal(kx3, (T3, m), dtype=jnp.float32)
    _, K3_ref, _ = pdca_forward_ref(X3, W, B_half, sigma2_log)

    _, K3a, _ = pdca_forward(X3, W, B_half, sigma2_log,
                             k_tile_budget_bytes=256 * 1024)   # 1-D, >1 row block
    jax.block_until_ready(K3a)
    assert jnp.allclose(K3a, K3_ref, atol=1e-5, rtol=1e-5)

    _, K3b, _ = pdca_forward(X3, W, B_half, sigma2_log,
                             k_tile_budget_bytes=4 * 1024)     # 2-D fallback
    jax.block_until_ready(K3b)
    assert jnp.allclose(K3b, K3_ref, atol=1e-5, rtol=1e-5)

    print("KERNEL_OK")
</pallas_src>

<mosaic_0001>
module attributes {stable_mosaic.version = 11 : i64} {
  func.func @_ab_kernel(%arg0: memref<1x1xf32, #tpu.memory_space<smem>>, %arg1: memref<8x4xf32, #tpu.memory_space<vmem>>, %arg2: memref<4x4xf32, #tpu.memory_space<vmem>>, %arg3: memref<8x8xf32, #tpu.memory_space<vmem>>, %arg4: memref<4x4xf32, #tpu.memory_space<vmem>>) attributes {dimension_semantics = [], scalar_prefetch = 0 : i64, scratch_operands = 0 : i64, tpu.core_type = #tpu.core_type<tc>} {
    %c0 = arith.constant 0 : index
    %c0_0 = arith.constant 0 : index
    %0 = vector.load %arg2[%c0, %c0_0] : memref<4x4xf32, #tpu.memory_space<vmem>>, vector<4x4xf32>
    %cst = arith.constant dense<0.000000e+00> : vector<4x4xf32>
    %1 = tpu.matmul %0, %0, %cst {dimension_numbers = #tpu.dot_dimension_numbers<[1], [1], [0], [0], [0, 0, 1, 0], [], []>} : vector<4x4xf32>, vector<4x4xf32>, vector<4x4xf32> -> vector<4x4xf32>
    %c0_1 = arith.constant 0 : index
    %c0_2 = arith.constant 0 : index
    %2 = vector.load %arg4[%c0_1, %c0_2] : memref<4x4xf32, #tpu.memory_space<vmem>>, vector<4x4xf32>
    tpu.vector_store %arg4[%c0_1, %c0_2], %1 {strides = array<i32>} : memref<4x4xf32, #tpu.memory_space<vmem>>, vector<4x4xf32>,
    %c0_3 = arith.constant 0 : index
    %c0_4 = arith.constant 0 : index
    %3 = vector.load %arg1[%c0_3, %c0_4] : memref<8x4xf32, #tpu.memory_space<vmem>>, vector<8x4xf32>
    %cst_5 = arith.constant dense<0.000000e+00> : vector<8x4xf32>
    %4 = tpu.matmul %3, %1, %cst_5 {dimension_numbers = #tpu.dot_dimension_numbers<[1], [0], [0], [1], [0, 0, 1, 1], [], []>} : vector<8x4xf32>, vector<4x4xf32>, vector<8x4xf32> -> vector<8x4xf32>
    %cst_6 = arith.constant dense<0.000000e+00> : vector<8x8xf32>
    %5 = tpu.matmul %4, %3, %cst_6 {dimension_numbers = #tpu.dot_dimension_numbers<[1], [1], [0], [0], [0, 0, 1, 0], [], []>} : vector<8x4xf32>, vector<8x4xf32>, vector<8x8xf32> -> vector<8x8xf32>
    %c0_7 = arith.constant 0 : index
    %c0_8 = arith.constant 0 : index
    %6 = memref.load %arg0[%c0_7, %c0_8] : memref<1x1xf32, #tpu.memory_space<smem>>
    %7 = math.exp %6 : f32
    %8 = tpu.iota {dimensions = array<i32: 0>} : vector<8x8xi32>
    %9 = tpu.iota {dimensions = array<i32: 1>} : vector<8x8xi32>
    %10 = arith.cmpi eq, %8, %9 : vector<8x8xi32>
    %11 = vector.broadcast %7 : f32 to vector<8x8xf32>
    %12 = arith.addf %5, %11 : vector<8x8xf32>
    %13 = arith.select %10, %12, %5 : vector<8x8xi1>, vector<8x8xf32>
    %c0_9 = arith.constant 0 : index
    %c0_10 = arith.constant 0 : index
    %14 = vector.load %arg3[%c0_9, %c0_10] : memref<8x8xf32, #tpu.memory_space<vmem>>, vector<8x8xf32>
    tpu.vector_store %arg3[%c0_9, %c0_10], %13 {strides = array<i32>} : memref<8x8xf32, #tpu.memory_space<vmem>>, vector<8x8xf32>,
    return
  }
}

</mosaic_0001>

<llo_original>
// kernel: tpu_custom_call.1
$region0: #{tpu_custom_call.1}
  #allocation0 [shape = 'u32[]', space=smem, size = 0x4, offset = 0x4, fixed_abs, tag = 'smem constant byte address 0x4 - core index']
  #allocation1 [shape = 'u32[72,128]{1,0:T(1,128)}', space=vmem, size = 0x9000, scoped, tag = 'internal scratch']
  #allocation2 [shape = 'f32[1,1]{1,0:T(1,128)S(6)}', space=smem, size = 0x200, scoped, tag = 'scoped memory for tpu_custom_call.1']
  %s0 = inlined_call_operand.<no memory space> [shape: f32[1,1], index: 0, kind: input, shape index: {}]
  %s1 = inlined_call_operand.vmem [shape: f32[8,4], index: 1, kind: input, shape index: {}]
  %s2 = inlined_call_operand.vmem [shape: f32[4,4], index: 2, kind: input, shape index: {}]
  %s3 = inlined_call_operand.hbm [shape: f32[8,8], index: 3, kind: output, shape index: {0}]
  %s4 = inlined_call_operand.hbm [shape: f32[4,4], index: 4, kind: output, shape index: {1}]
  %5 = xla_tuple %s3, %s4
  %s6 = sld [smem:[#allocation0]]
  $region30: #{tpu_custom_call.1} parent=0
    _
  %s8 = ssub.s32 1, %s6
  %s9 = scalar_select 0, %s8, %s6
  %10 = sst [smem:[#allocation2]] %s0
  $region1: #{tpu_custom_call.1} parent=0
    #allocation3 [shape = 'u8[4096]{0}', space=vmem, size = 0x1000, scoped, tag = 'output window, operand 0, single buffered']
    #allocation4 [shape = 's32[1]{0}', space=sflag, size = 0x4, scoped, tag = 'scoped memory for tpu_custom_call.1']
    #allocation5 [shape = 'u8[2048]{0}', space=vmem, size = 0x800, scoped, tag = 'output window, operand 1, single buffered']
    #allocation6 [shape = 's32[1]{0}', space=sflag, size = 0x4, scoped, tag = 'scoped memory for tpu_custom_call.1']
    %11 = vsyncpa [#allocation4], 0
    %12 = vsyncpa [#allocation6], 0
    // Predicated region
    $region2: #{tpu_custom_call.1} parent=1 // pred_check
      _
    $region3: #{tpu_custom_call.1} parent=1 // pred_check_branch
      %14 = sbr.rel (0) target = $region5
    $region4: #{tpu_custom_call.1} parent=1 // pred_region
      _
    $region5: #{tpu_custom_call.1} parent=1 // pred_fallthru
      _
    // Predicated region
    $region6: #{tpu_custom_call.1} parent=1 // pred_check
      _
    $region7: #{tpu_custom_call.1} parent=1 // pred_check_branch
      %16 = sbr.rel (0) target = $region9
    $region8: #{tpu_custom_call.1} parent=1 // pred_region
      _
    $region9: #{tpu_custom_call.1} parent=1 // pred_fallthru
      _
    // Predicated region
    $region10: #{tpu_custom_call.1} parent=1 // pred_check
      _
    $region11: #{tpu_custom_call.1} parent=1 // pred_check_branch
      %18 = sbr.rel (0) target = $region13
    $region12: #{tpu_custom_call.1} parent=1 // pred_region
      _
    $region13: #{tpu_custom_call.1} parent=1 // pred_fallthru
      _
    %v19 = vld [vmem:[%s2] sm:$0xf]
    %vm20 = vcmask 31744
    %v22 = vsel %vm20, %v19, 0
    %24 = vmatpush.xpose.msra.mxu0 0.0
    %25 = vmatpush.xpose.msra.mxu0 0.0
    %26 = vmatpush.xpose.msra.mxu0 0.0
    %27 = vmatpush.xpose.msra.mxu0 0.0
    %28 = vmatpush.xpose.msra.mxu0 0.0
    %29 = vmatpush.xpose.msra.mxu0 0.0
    %30 = vmatpush.xpose.msra.mxu0 0.0
    %31 = vmatpush.xpose.msra.mxu0 0.0
    %32 = vmatpush.xpose.msra.mxu0 0.0
    %33 = vmatpush.xpose.msra.mxu0 0.0
    %34 = vmatpush.xpose.msra.mxu0 0.0
    %35 = vmatpush.xpose.msra.mxu0 0.0
    %36 = vmatpush.xpose.msra.mxu0 0.0
    %37 = vmatpush.xpose.msra.mxu0 0.0
    %38 = vmatpush.xpose.msra.mxu0 0.0
    %39 = vmatpush.xpose.msra.mxu0 %v22
    %40 = vmatmul.f32.gmra.mxu0 %v22
    %v41 = vpop.f32.mrf.mxu0
    %v42 = vadd.f32 0.0, %v41
    %43 = vdwg.mxu0
    %vm44 = vcmask 27648
    %45 = vst.msk [vmem:[#allocation5] sm:$0xf] %vm44, %v42
    %v46 = vld [vmem:[%s1] sm:$0xff]
    %v48 = vsel %vm20, %v46, 0
    %vm50 = vcmask 1043456
    %v52 = vsel %vm50, %v42, 0
    %54 = vmatpush.msra.mxu0 0.0
    %55 = vmatpush.msra.mxu0 0.0
    %56 = vmatpush.msra.mxu0 0.0
    %57 = vmatpush.msra.mxu0 0.0
    %58 = vmatpush.msra.mxu0 0.0
    %59 = vmatpush.msra.mxu0 0.0
    %60 = vmatpush.msra.mxu0 0.0
    %61 = vmatpush.msra.mxu0 0.0
    %62 = vmatpush.msra.mxu0 0.0
    %63 = vmatpush.msra.mxu0 0.0
    %64 = vmatpush.msra.mxu0 0.0
    %65 = vmatpush.msra.mxu0 0.0
    %66 = vmatpush.msra.mxu0 0.0
    %67 = vmatpush.msra.mxu0 0.0
    %68 = vmatpush.msra.mxu0 0.0
    %69 = vmatpush.msra.mxu0 %v52
    %70 = vmatmul.f32.gmra.mxu0 %v48
    %v71 = vpop.f32.mrf.mxu0
    %v72 = vadd.f32 0.0, %v71
    %73 = vdwg.mxu0
    %v75 = vsel %vm20, %v72, 0
    %77 = vmatpush.xpose.msra.mxu0 0.0
    %78 = vmatpush.xpose.msra.mxu0 0.0
    %79 = vmatpush.xpose.msra.mxu0 0.0
    %80 = vmatpush.xpose.msra.mxu0 0.0
    %81 = vmatpush.xpose.msra.mxu0 0.0
    %82 = vmatpush.xpose.msra.mxu0 0.0
    %83 = vmatpush.xpose.msra.mxu0 0.0
    %84 = vmatpush.xpose.msra.mxu0 0.0
    %85 = vmatpush.xpose.msra.mxu0 0.0
    %86 = vmatpush.xpose.msra.mxu0 0.0
    %87 = vmatpush.xpose.msra.mxu0 0.0
    %88 = vmatpush.xpose.msra.mxu0 0.0
    %89 = vmatpush.xpose.msra.mxu0 0.0
    %90 = vmatpush.xpose.msra.mxu0 0.0
    %91 = vmatpush.xpose.msra.mxu0 0.0
    %92 = vmatpush.xpose.msra.mxu0 %v48
    %93 = vmatmul.f32.gmra.mxu0 %v75
    %v94 = vpop.f32.mrf.mxu0
    %v95 = vadd.f32 0.0, %v94
    %96 = vdwg.mxu0
    %s97 = sld [smem:[#allocation2]]
    %v98 = vstv %s97
    %v99 = vmul.f32 %v98, 1.442695
    %v100 = vpow.pop %v99
    %s101 = vtos %v100
    %v102 = vlaneseq
    %v103 = vshrl.u32 %v102, 7
    %v104 = vlaneseq
    %v105 = vand.u32 %v104, 127
    %vm106 = vcmp.eq.s32.totalorder %v103, %v105
    %v107 = vstv %s101
    %v108 = vadd.f32 %v95, %v107
    %v109 = vsel %vm106, %v108, %v95
    %vm110 = vcmask 64512
    %111 = vst.msk [vmem:[#allocation3] sm:$0xff] %vm110, %v109
    // Predicated region
    $region14: #{tpu_custom_call.1} parent=1 // pred_check
      _
    $region15: #{tpu_custom_call.1} parent=1 // pred_check_branch
      %113 = sbr.rel (0) target = $region17
    $region16: #{tpu_custom_call.1} parent=1 // pred_region
      %115 = vsyncadd [#allocation4], 0
      %s117 = sshll.u32 [#allocation3], 4
      %s118 = int_to_ptr.vmem [resolvable:$true] %s117
      %s119 = sshll.u32 %s3, 4
      %s120 = int_to_ptr.hbm [resolvable:$true] %s119
      %122 = dma.vmem_to_hbm [thread:$0]  %s118, 128, %s120, [#allocation4]
    $region17: #{tpu_custom_call.1} parent=1 // pred_fallthru
      _
    // Predicated region
    $region18: #{tpu_custom_call.1} parent=1 // pred_check
      _
    $region19: #{tpu_custom_call.1} parent=1 // pred_check_branch
      %124 = sbr.rel (0) target = $region21
    $region20: #{tpu_custom_call.1} parent=1 // pred_region
      %126 = vsyncadd [#allocation6], 0
      %s128 = sshll.u32 [#allocation5], 4
      %s129 = int_to_ptr.vmem [resolvable:$true] %s128
      %s130 = sshll.u32 %s4, 4
      %s131 = int_to_ptr.hbm [resolvable:$true] %s130
      %133 = dma.vmem_to_hbm [thread:$0]  %s129, 64, %s131, [#allocation6]
    $region21: #{tpu_custom_call.1} parent=1 // pred_fallthru
      _
    // Predicated region
    $region22: #{tpu_custom_call.1} parent=1 // pred_check
      _
    $region23: #{tpu_custom_call.1} parent=1 // pred_check_branch
      %135 = sbr.rel (0) target = $region25
    $region24: #{tpu_custom_call.1} parent=1 // pred_region
      %137 = dma.done [#allocation4], 128
    $region25: #{tpu_custom_call.1} parent=1 // pred_fallthru
      _
    // Predicated region
    $region26: #{tpu_custom_call.1} parent=1 // pred_check
      _
    $region27: #{tpu_custom_call.1} parent=1 // pred_check_branch
      %139 = sbr.rel (0) target = $region29
    $region28: #{tpu_custom_call.1} parent=1 // pred_region
      %141 = dma.done [#allocation6], 64
    $region29: #{tpu_custom_call.1} parent=1 // pred_fallthru
      _
    %142 = vsyncpa [#allocation4], 1
    %143 = vsyncpa [#allocation6], 1

</llo_original>
